<compile_context>
chip_gen: v5e
topology: v5e:2x2
jax: 0.10.0
libtpu: 0.0.40
codegen_flags: <defaults>
</compile_context>

<pallas_src>
import functools

import jax
import jax.numpy as jnp
from jax.experimental import pallas as pl
from jax.experimental.pallas import tpu as pltpu

IN = 6       # input features
HIDDEN = 10  # hidden features
OUT = 4      # output features

LANES = 128           # vreg lane width
MIN_TILE_ROWS = 1024  # 8 sublane-chunks x 128 lanes -> (8,128)-aligned blocks

# Flat SMEM parameter layout (f32[PARAM_LEN]):
W1_OFF = 0                       # w1[k, j] -> W1_OFF + k*HIDDEN + j   (60 values)
B1_OFF = W1_OFF + IN * HIDDEN    # b1[j]    -> B1_OFF + j              (10 values)
W2_OFF = B1_OFF + HIDDEN         # w2[m, j] -> W2_OFF + m*OUT + j      (40 values)
B2_OFF = W2_OFF + HIDDEN * OUT   # b2[j]    -> B2_OFF + j               (4 values)
PARAM_LEN = 128                  # 114 used, padded to 128


def pack_params(w1, b1, w2, b2):
    """Pack all parameters into a single flat f32[PARAM_LEN] array (SMEM scalars)."""
    assert w1.shape == (IN, HIDDEN) and b1.shape == (HIDDEN,)
    assert w2.shape == (HIDDEN, OUT) and b2.shape == (OUT,)
    flat = jnp.concatenate([
        w1.astype(jnp.float32).reshape(-1),
        b1.astype(jnp.float32).reshape(-1),
        w2.astype(jnp.float32).reshape(-1),
        b2.astype(jnp.float32).reshape(-1),
    ])
    return jnp.pad(flat, (0, PARAM_LEN - flat.shape[0]))


def _mlp_kernel(p_ref, x_ref, o_ref):
    """One batch tile, batch-on-lanes layout.

    p_ref: SMEM f32[PARAM_LEN]      scalar weights / biases
    x_ref: VMEM f32[IN,  TC, 128]   IN dense input planes (batch on sublanes+lanes)
    o_ref: VMEM f32[OUT, TC, 128]   OUT dense softmax planes
    """
    # Load the 6 input planes once; each is a fully dense (TC, 128) tile.
    x = [x_ref[k] for k in range(IN)]

    # ---- layer 1: Linear(6 -> 10) + ReLU, scalar*vector FMAs on dense vregs ----
    h = []
    for j in range(HIDDEN):
        acc = x[0] * p_ref[W1_OFF + j] + p_ref[B1_OFF + j]
        for k in range(1, IN):
            acc = acc + x[k] * p_ref[W1_OFF + k * HIDDEN + j]
        h.append(jnp.maximum(acc, 0.0))

    # ---- layer 2: Linear(10 -> 4), scalar*vector FMAs ----
    logits = []
    for j in range(OUT):
        acc = h[0] * p_ref[W2_OFF + j] + p_ref[B2_OFF + j]
        for m in range(1, HIDDEN):
            acc = acc + h[m] * p_ref[W2_OFF + m * OUT + j]
        logits.append(acc)

    # ---- numerically stable softmax across the 4 planes: pure elementwise ----
    mx = jnp.maximum(jnp.maximum(logits[0], logits[1]),
                     jnp.maximum(logits[2], logits[3]))
    e = [jnp.exp(l - mx) for l in logits]
    denom = (e[0] + e[1]) + (e[2] + e[3])
    inv = pl.reciprocal(denom, approx=False)   # exact: rows sum to 1 within 1e-5
    for j in range(OUT):
        o_ref[j] = e[j] * inv


def _round_up(a, m):
    return ((a + m - 1) // m) * m


@functools.partial(jax.jit, static_argnames=("block_rows",))
def model_1_forward(x, packed_params, *, block_rows=2048):
    """Forward pass of Model_1: softmax(relu(x @ W1 + b1) @ W2 + b2), x: (B, 6)."""
    B = x.shape[0]
    x = x.astype(jnp.float32)

    # --- choose an (8,128)-aligned batch tiling ---
    block_rows = max(MIN_TILE_ROWS, (block_rows // MIN_TILE_ROWS) * MIN_TILE_ROWS)
    if B <= MIN_TILE_ROWS:
        b_pad = _round_up(B, LANES)            # one tile, 128-lane aligned
        tile_chunks = b_pad // LANES
        n_tiles = 1
    else:
        # >= 2 tiles so both v7x TensorCores get work; tiles stay (8,128)-aligned.
        tile_rows = min(block_rows, _round_up(B, 2 * MIN_TILE_ROWS) // 2)
        tile_rows = max(MIN_TILE_ROWS, (tile_rows // MIN_TILE_ROWS) * MIN_TILE_ROWS)
        b_pad = _round_up(B, tile_rows)
        tile_chunks = tile_rows // LANES
        n_tiles = b_pad // tile_rows

    # --- batch-on-lanes layout: feature-major dense planes (IN, b_pad/128, 128) ---
    xt = x.T                                   # (IN, B) feature-major
    if b_pad != B:
        xt = jnp.pad(xt, ((0, 0), (0, b_pad - B)))
    x_planes = xt.reshape(IN, b_pad // LANES, LANES)

    out_planes = pl.pallas_call(
        _mlp_kernel,
        out_shape=jax.ShapeDtypeStruct((OUT, b_pad // LANES, LANES), jnp.float32),
        grid=(n_tiles,),
        in_specs=[
            # flat parameter vector -> SMEM, read as scalars inside the kernel
            pl.BlockSpec(memory_space=pltpu.MemorySpace.SMEM),
            # batch tile of the input planes; lane-dense contiguous DMA
            pl.BlockSpec((IN, tile_chunks, LANES), lambda i: (0, i, 0)),
        ],
        out_specs=pl.BlockSpec((OUT, tile_chunks, LANES), lambda i: (0, i, 0)),
        compiler_params=pltpu.CompilerParams(
            dimension_semantics=("parallel",),
        ),
    )(packed_params, x_planes)

    out = out_planes.reshape(OUT, b_pad)[:, :B]
    return out.T                               # back to batch-major (B, OUT)


def init_params(key):
    # Deterministic init mimicking nn.Linear default: U(-1/sqrt(fan_in), +1/sqrt(fan_in)).
    k1, k2, k3, k4 = jax.random.split(key, 4)
    bound1 = 1.0 / jnp.sqrt(float(IN))
    bound2 = 1.0 / jnp.sqrt(float(HIDDEN))
    w1 = jax.random.uniform(k1, (IN, HIDDEN), jnp.float32, -bound1, bound1)  # (in, out)
    b1 = jax.random.uniform(k2, (HIDDEN,), jnp.float32, -bound1, bound1)
    w2 = jax.random.uniform(k3, (HIDDEN, OUT), jnp.float32, -bound2, bound2)
    b2 = jax.random.uniform(k4, (OUT,), jnp.float32, -bound2, bound2)
    return w1, b1, w2, b2


if __name__ == "__main__":
    key = jax.random.PRNGKey(0)
    pkey, xkey1, xkey2 = jax.random.split(key, 3)
    w1, b1, w2, b2 = init_params(pkey)
    packed = pack_params(w1, b1, w2, b2)

    def reference(x):
        h = jnp.maximum(x @ w1 + b1, 0.0)
        return jax.nn.softmax(h @ w2 + b2, axis=-1)

    # --- small batch: single-tile path ---
    B1 = 8
    x1 = jax.random.normal(xkey1, (B1, IN), jnp.float32)
    out1 = jax.block_until_ready(model_1_forward(x1, packed))
    assert out1.shape == (B1, OUT)
    assert jnp.allclose(out1, reference(x1), atol=1e-5, rtol=1e-5)
    assert jnp.allclose(jnp.sum(out1, axis=-1), 1.0, atol=1e-5)

    # --- larger batch: multi-tile "parallel" grid path (2 tiles, padded batch) ---
    B2 = 2304
    x2 = jax.random.normal(xkey2, (B2, IN), jnp.float32)
    out2 = jax.block_until_ready(model_1_forward(x2, packed))
    assert out2.shape == (B2, OUT)
    assert jnp.allclose(out2, reference(x2), atol=1e-5, rtol=1e-5)
    assert jnp.allclose(jnp.sum(out2, axis=-1), 1.0, atol=1e-5)

    print("KERNEL_OK")
</pallas_src>

<mosaic_0001>
module attributes {stable_mosaic.version = 11 : i64} {
  func.func @_mlp_kernel(%arg0: i32, %arg1: memref<128xf32, #tpu.memory_space<smem>>, %arg2: memref<6x1x128xf32, #tpu.memory_space<vmem>>, %arg3: memref<4x1x128xf32, #tpu.memory_space<vmem>>) attributes {dimension_semantics = [#tpu.dimension_semantics<parallel>], iteration_bounds = array<i64: 1>, scalar_prefetch = 0 : i64, scratch_operands = 0 : i64, tpu.core_type = #tpu.core_type<tc>, window_params = [{transform_indices = @transform_0, window_bounds = array<i64: 128>}, {transform_indices = @transform_1, window_bounds = array<i64: 6, 1, 128>}, {transform_indices = @transform_2, window_bounds = array<i64: 4, 1, 128>}]} {
    %c0 = arith.constant 0 : index
    %c0_0 = arith.constant 0 : index
    %c0_1 = arith.constant 0 : index
    %0 = vector.load %arg2[%c0, %c0_0, %c0_1] : memref<6x1x128xf32, #tpu.memory_space<vmem>>, vector<1x1x128xf32>
    %1 = vector.shape_cast %0 : vector<1x1x128xf32> to vector<1x128xf32>
    %c1 = arith.constant 1 : index
    %c0_2 = arith.constant 0 : index
    %c0_3 = arith.constant 0 : index
    %2 = vector.load %arg2[%c1, %c0_2, %c0_3] : memref<6x1x128xf32, #tpu.memory_space<vmem>>, vector<1x1x128xf32>
    %3 = vector.shape_cast %2 : vector<1x1x128xf32> to vector<1x128xf32>
    %c2 = arith.constant 2 : index
    %c0_4 = arith.constant 0 : index
    %c0_5 = arith.constant 0 : index
    %4 = vector.load %arg2[%c2, %c0_4, %c0_5] : memref<6x1x128xf32, #tpu.memory_space<vmem>>, vector<1x1x128xf32>
    %5 = vector.shape_cast %4 : vector<1x1x128xf32> to vector<1x128xf32>
    %c3 = arith.constant 3 : index
    %c0_6 = arith.constant 0 : index
    %c0_7 = arith.constant 0 : index
    %6 = vector.load %arg2[%c3, %c0_6, %c0_7] : memref<6x1x128xf32, #tpu.memory_space<vmem>>, vector<1x1x128xf32>
    %7 = vector.shape_cast %6 : vector<1x1x128xf32> to vector<1x128xf32>
    %c4 = arith.constant 4 : index
    %c0_8 = arith.constant 0 : index
    %c0_9 = arith.constant 0 : index
    %8 = vector.load %arg2[%c4, %c0_8, %c0_9] : memref<6x1x128xf32, #tpu.memory_space<vmem>>, vector<1x1x128xf32>
    %9 = vector.shape_cast %8 : vector<1x1x128xf32> to vector<1x128xf32>
    %c5 = arith.constant 5 : index
    %c0_10 = arith.constant 0 : index
    %c0_11 = arith.constant 0 : index
    %10 = vector.load %arg2[%c5, %c0_10, %c0_11] : memref<6x1x128xf32, #tpu.memory_space<vmem>>, vector<1x1x128xf32>
    %11 = vector.shape_cast %10 : vector<1x1x128xf32> to vector<1x128xf32>
    %c0_12 = arith.constant 0 : index
    %12 = memref.load %arg1[%c0_12] : memref<128xf32, #tpu.memory_space<smem>>
    %13 = vector.broadcast %12 : f32 to vector<1x128xf32>
    %14 = arith.mulf %1, %13 : vector<1x128xf32>
    %c60 = arith.constant 60 : index
    %15 = memref.load %arg1[%c60] : memref<128xf32, #tpu.memory_space<smem>>
    %16 = vector.broadcast %15 : f32 to vector<1x128xf32>
    %17 = arith.addf %14, %16 : vector<1x128xf32>
    %c10 = arith.constant 10 : index
    %18 = memref.load %arg1[%c10] : memref<128xf32, #tpu.memory_space<smem>>
    %19 = vector.broadcast %18 : f32 to vector<1x128xf32>
    %20 = arith.mulf %3, %19 : vector<1x128xf32>
    %21 = arith.addf %17, %20 : vector<1x128xf32>
    %c20 = arith.constant 20 : index
    %22 = memref.load %arg1[%c20] : memref<128xf32, #tpu.memory_space<smem>>
    %23 = vector.broadcast %22 : f32 to vector<1x128xf32>
    %24 = arith.mulf %5, %23 : vector<1x128xf32>
    %25 = arith.addf %21, %24 : vector<1x128xf32>
    %c30 = arith.constant 30 : index
    %26 = memref.load %arg1[%c30] : memref<128xf32, #tpu.memory_space<smem>>
    %27 = vector.broadcast %26 : f32 to vector<1x128xf32>
    %28 = arith.mulf %7, %27 : vector<1x128xf32>
    %29 = arith.addf %25, %28 : vector<1x128xf32>
    %c40 = arith.constant 40 : index
    %30 = memref.load %arg1[%c40] : memref<128xf32, #tpu.memory_space<smem>>
    %31 = vector.broadcast %30 : f32 to vector<1x128xf32>
    %32 = arith.mulf %9, %31 : vector<1x128xf32>
    %33 = arith.addf %29, %32 : vector<1x128xf32>
    %c50 = arith.constant 50 : index
    %34 = memref.load %arg1[%c50] : memref<128xf32, #tpu.memory_space<smem>>
    %35 = vector.broadcast %34 : f32 to vector<1x128xf32>
    %36 = arith.mulf %11, %35 : vector<1x128xf32>
    %37 = arith.addf %33, %36 : vector<1x128xf32>
    %cst = arith.constant 0.000000e+00 : f32
    %38 = vector.broadcast %cst : f32 to vector<1x128xf32>
    %39 = arith.maximumf %37, %38 : vector<1x128xf32>
    %c1_13 = arith.constant 1 : index
    %40 = memref.load %arg1[%c1_13] : memref<128xf32, #tpu.memory_space<smem>>
    %41 = vector.broadcast %40 : f32 to vector<1x128xf32>
    %42 = arith.mulf %1, %41 : vector<1x128xf32>
    %c61 = arith.constant 61 : index
    %43 = memref.load %arg1[%c61] : memref<128xf32, #tpu.memory_space<smem>>
    %44 = vector.broadcast %43 : f32 to vector<1x128xf32>
    %45 = arith.addf %42, %44 : vector<1x128xf32>
    %c11 = arith.constant 11 : index
    %46 = memref.load %arg1[%c11] : memref<128xf32, #tpu.memory_space<smem>>
    %47 = vector.broadcast %46 : f32 to vector<1x128xf32>
    %48 = arith.mulf %3, %47 : vector<1x128xf32>
    %49 = arith.addf %45, %48 : vector<1x128xf32>
    %c21 = arith.constant 21 : index
    %50 = memref.load %arg1[%c21] : memref<128xf32, #tpu.memory_space<smem>>
    %51 = vector.broadcast %50 : f32 to vector<1x128xf32>
    %52 = arith.mulf %5, %51 : vector<1x128xf32>
    %53 = arith.addf %49, %52 : vector<1x128xf32>
    %c31 = arith.constant 31 : index
    %54 = memref.load %arg1[%c31] : memref<128xf32, #tpu.memory_space<smem>>
    %55 = vector.broadcast %54 : f32 to vector<1x128xf32>
    %56 = arith.mulf %7, %55 : vector<1x128xf32>
    %57 = arith.addf %53, %56 : vector<1x128xf32>
    %c41 = arith.constant 41 : index
    %58 = memref.load %arg1[%c41] : memref<128xf32, #tpu.memory_space<smem>>
    %59 = vector.broadcast %58 : f32 to vector<1x128xf32>
    %60 = arith.mulf %9, %59 : vector<1x128xf32>
    %61 = arith.addf %57, %60 : vector<1x128xf32>
    %c51 = arith.constant 51 : index
    %62 = memref.load %arg1[%c51] : memref<128xf32, #tpu.memory_space<smem>>
    %63 = vector.broadcast %62 : f32 to vector<1x128xf32>
    %64 = arith.mulf %11, %63 : vector<1x128xf32>
    %65 = arith.addf %61, %64 : vector<1x128xf32>
    %cst_14 = arith.constant 0.000000e+00 : f32
    %66 = vector.broadcast %cst_14 : f32 to vector<1x128xf32>
    %67 = arith.maximumf %65, %66 : vector<1x128xf32>
    %c2_15 = arith.constant 2 : index
    %68 = memref.load %arg1[%c2_15] : memref<128xf32, #tpu.memory_space<smem>>
    %69 = vector.broadcast %68 : f32 to vector<1x128xf32>
    %70 = arith.mulf %1, %69 : vector<1x128xf32>
    %c62 = arith.constant 62 : index
    %71 = memref.load %arg1[%c62] : memref<128xf32, #tpu.memory_space<smem>>
    %72 = vector.broadcast %71 : f32 to vector<1x128xf32>
    %73 = arith.addf %70, %72 : vector<1x128xf32>
    %c12 = arith.constant 12 : index
    %74 = memref.load %arg1[%c12] : memref<128xf32, #tpu.memory_space<smem>>
    %75 = vector.broadcast %74 : f32 to vector<1x128xf32>
    %76 = arith.mulf %3, %75 : vector<1x128xf32>
    %77 = arith.addf %73, %76 : vector<1x128xf32>
    %c22 = arith.constant 22 : index
    %78 = memref.load %arg1[%c22] : memref<128xf32, #tpu.memory_space<smem>>
    %79 = vector.broadcast %78 : f32 to vector<1x128xf32>
    %80 = arith.mulf %5, %79 : vector<1x128xf32>
    %81 = arith.addf %77, %80 : vector<1x128xf32>
    %c32 = arith.constant 32 : index
    %82 = memref.load %arg1[%c32] : memref<128xf32, #tpu.memory_space<smem>>
    %83 = vector.broadcast %82 : f32 to vector<1x128xf32>
    %84 = arith.mulf %7, %83 : vector<1x128xf32>
    %85 = arith.addf %81, %84 : vector<1x128xf32>
    %c42 = arith.constant 42 : index
    %86 = memref.load %arg1[%c42] : memref<128xf32, #tpu.memory_space<smem>>
    %87 = vector.broadcast %86 : f32 to vector<1x128xf32>
    %88 = arith.mulf %9, %87 : vector<1x128xf32>
    %89 = arith.addf %85, %88 : vector<1x128xf32>
    %c52 = arith.constant 52 : index
    %90 = memref.load %arg1[%c52] : memref<128xf32, #tpu.memory_space<smem>>
    %91 = vector.broadcast %90 : f32 to vector<1x128xf32>
    %92 = arith.mulf %11, %91 : vector<1x128xf32>
    %93 = arith.addf %89, %92 : vector<1x128xf32>
    %cst_16 = arith.constant 0.000000e+00 : f32
    %94 = vector.broadcast %cst_16 : f32 to vector<1x128xf32>
    %95 = arith.maximumf %93, %94 : vector<1x128xf32>
    %c3_17 = arith.constant 3 : index
    %96 = memref.load %arg1[%c3_17] : memref<128xf32, #tpu.memory_space<smem>>
    %97 = vector.broadcast %96 : f32 to vector<1x128xf32>
    %98 = arith.mulf %1, %97 : vector<1x128xf32>
    %c63 = arith.constant 63 : index
    %99 = memref.load %arg1[%c63] : memref<128xf32, #tpu.memory_space<smem>>
    %100 = vector.broadcast %99 : f32 to vector<1x128xf32>
    %101 = arith.addf %98, %100 : vector<1x128xf32>
    %c13 = arith.constant 13 : index
    %102 = memref.load %arg1[%c13] : memref<128xf32, #tpu.memory_space<smem>>
    %103 = vector.broadcast %102 : f32 to vector<1x128xf32>
    %104 = arith.mulf %3, %103 : vector<1x128xf32>
    %105 = arith.addf %101, %104 : vector<1x128xf32>
    %c23 = arith.constant 23 : index
    %106 = memref.load %arg1[%c23] : memref<128xf32, #tpu.memory_space<smem>>
    %107 = vector.broadcast %106 : f32 to vector<1x128xf32>
    %108 = arith.mulf %5, %107 : vector<1x128xf32>
    %109 = arith.addf %105, %108 : vector<1x128xf32>
    %c33 = arith.constant 33 : index
    %110 = memref.load %arg1[%c33] : memref<128xf32, #tpu.memory_space<smem>>
    %111 = vector.broadcast %110 : f32 to vector<1x128xf32>
    %112 = arith.mulf %7, %111 : vector<1x128xf32>
    %113 = arith.addf %109, %112 : vector<1x128xf32>
    %c43 = arith.constant 43 : index
    %114 = memref.load %arg1[%c43] : memref<128xf32, #tpu.memory_space<smem>>
    %115 = vector.broadcast %114 : f32 to vector<1x128xf32>
    %116 = arith.mulf %9, %115 : vector<1x128xf32>
    %117 = arith.addf %113, %116 : vector<1x128xf32>
    %c53 = arith.constant 53 : index
    %118 = memref.load %arg1[%c53] : memref<128xf32, #tpu.memory_space<smem>>
    %119 = vector.broadcast %118 : f32 to vector<1x128xf32>
    %120 = arith.mulf %11, %119 : vector<1x128xf32>
    %121 = arith.addf %117, %120 : vector<1x128xf32>
    %cst_18 = arith.constant 0.000000e+00 : f32
    %122 = vector.broadcast %cst_18 : f32 to vector<1x128xf32>
    %123 = arith.maximumf %121, %122 : vector<1x128xf32>
    %c4_19 = arith.constant 4 : index
    %124 = memref.load %arg1[%c4_19] : memref<128xf32, #tpu.memory_space<smem>>
    %125 = vector.broadcast %124 : f32 to vector<1x128xf32>
    %126 = arith.mulf %1, %125 : vector<1x128xf32>
    %c64 = arith.constant 64 : index
    %127 = memref.load %arg1[%c64] : memref<128xf32, #tpu.memory_space<smem>>
    %128 = vector.broadcast %127 : f32 to vector<1x128xf32>
    %129 = arith.addf %126, %128 : vector<1x128xf32>
    %c14 = arith.constant 14 : index
    %130 = memref.load %arg1[%c14] : memref<128xf32, #tpu.memory_space<smem>>
    %131 = vector.broadcast %130 : f32 to vector<1x128xf32>
    %132 = arith.mulf %3, %131 : vector<1x128xf32>
    %133 = arith.addf %129, %132 : vector<1x128xf32>
    %c24 = arith.constant 24 : index
    %134 = memref.load %arg1[%c24] : memref<128xf32, #tpu.memory_space<smem>>
    %135 = vector.broadcast %134 : f32 to vector<1x128xf32>
    %136 = arith.mulf %5, %135 : vector<1x128xf32>
    %137 = arith.addf %133, %136 : vector<1x128xf32>
    %c34 = arith.constant 34 : index
    %138 = memref.load %arg1[%c34] : memref<128xf32, #tpu.memory_space<smem>>
    %139 = vector.broadcast %138 : f32 to vector<1x128xf32>
    %140 = arith.mulf %7, %139 : vector<1x128xf32>
    %141 = arith.addf %137, %140 : vector<1x128xf32>
    %c44 = arith.constant 44 : index
    %142 = memref.load %arg1[%c44] : memref<128xf32, #tpu.memory_space<smem>>
    %143 = vector.broadcast %142 : f32 to vector<1x128xf32>
    %144 = arith.mulf %9, %143 : vector<1x128xf32>
    %145 = arith.addf %141, %144 : vector<1x128xf32>
    %c54 = arith.constant 54 : index
    %146 = memref.load %arg1[%c54] : memref<128xf32, #tpu.memory_space<smem>>
    %147 = vector.broadcast %146 : f32 to vector<1x128xf32>
    %148 = arith.mulf %11, %147 : vector<1x128xf32>
    %149 = arith.addf %145, %148 : vector<1x128xf32>
    %cst_20 = arith.constant 0.000000e+00 : f32
    %150 = vector.broadcast %cst_20 : f32 to vector<1x128xf32>
    %151 = arith.maximumf %149, %150 : vector<1x128xf32>
    %c5_21 = arith.constant 5 : index
    %152 = memref.load %arg1[%c5_21] : memref<128xf32, #tpu.memory_space<smem>>
    %153 = vector.broadcast %152 : f32 to vector<1x128xf32>
    %154 = arith.mulf %1, %153 : vector<1x128xf32>
    %c65 = arith.constant 65 : index
    %155 = memref.load %arg1[%c65] : memref<128xf32, #tpu.memory_space<smem>>
    %156 = vector.broadcast %155 : f32 to vector<1x128xf32>
    %157 = arith.addf %154, %156 : vector<1x128xf32>
    %c15 = arith.constant 15 : index
    %158 = memref.load %arg1[%c15] : memref<128xf32, #tpu.memory_space<smem>>
    %159 = vector.broadcast %158 : f32 to vector<1x128xf32>
    %160 = arith.mulf %3, %159 : vector<1x128xf32>
    %161 = arith.addf %157, %160 : vector<1x128xf32>
    %c25 = arith.constant 25 : index
    %162 = memref.load %arg1[%c25] : memref<128xf32, #tpu.memory_space<smem>>
    %163 = vector.broadcast %162 : f32 to vector<1x128xf32>
    %164 = arith.mulf %5, %163 : vector<1x128xf32>
    %165 = arith.addf %161, %164 : vector<1x128xf32>
    %c35 = arith.constant 35 : index
    %166 = memref.load %arg1[%c35] : memref<128xf32, #tpu.memory_space<smem>>
    %167 = vector.broadcast %166 : f32 to vector<1x128xf32>
    %168 = arith.mulf %7, %167 : vector<1x128xf32>
    %169 = arith.addf %165, %168 : vector<1x128xf32>
    %c45 = arith.constant 45 : index
    %170 = memref.load %arg1[%c45] : memref<128xf32, #tpu.memory_space<smem>>
    %171 = vector.broadcast %170 : f32 to vector<1x128xf32>
    %172 = arith.mulf %9, %171 : vector<1x128xf32>
    %173 = arith.addf %169, %172 : vector<1x128xf32>
    %c55 = arith.constant 55 : index
    %174 = memref.load %arg1[%c55] : memref<128xf32, #tpu.memory_space<smem>>
    %175 = vector.broadcast %174 : f32 to vector<1x128xf32>
    %176 = arith.mulf %11, %175 : vector<1x128xf32>
    %177 = arith.addf %173, %176 : vector<1x128xf32>
    %cst_22 = arith.constant 0.000000e+00 : f32
    %178 = vector.broadcast %cst_22 : f32 to vector<1x128xf32>
    %179 = arith.maximumf %177, %178 : vector<1x128xf32>
    %c6 = arith.constant 6 : index
    %180 = memref.load %arg1[%c6] : memref<128xf32, #tpu.memory_space<smem>>
    %181 = vector.broadcast %180 : f32 to vector<1x128xf32>
    %182 = arith.mulf %1, %181 : vector<1x128xf32>
    %c66 = arith.constant 66 : index
    %183 = memref.load %arg1[%c66] : memref<128xf32, #tpu.memory_space<smem>>
    %184 = vector.broadcast %183 : f32 to vector<1x128xf32>
    %185 = arith.addf %182, %184 : vector<1x128xf32>
    %c16 = arith.constant 16 : index
    %186 = memref.load %arg1[%c16] : memref<128xf32, #tpu.memory_space<smem>>
    %187 = vector.broadcast %186 : f32 to vector<1x128xf32>
    %188 = arith.mulf %3, %187 : vector<1x128xf32>
    %189 = arith.addf %185, %188 : vector<1x128xf32>
    %c26 = arith.constant 26 : index
    %190 = memref.load %arg1[%c26] : memref<128xf32, #tpu.memory_space<smem>>
    %191 = vector.broadcast %190 : f32 to vector<1x128xf32>
    %192 = arith.mulf %5, %191 : vector<1x128xf32>
    %193 = arith.addf %189, %192 : vector<1x128xf32>
    %c36 = arith.constant 36 : index
    %194 = memref.load %arg1[%c36] : memref<128xf32, #tpu.memory_space<smem>>
    %195 = vector.broadcast %194 : f32 to vector<1x128xf32>
    %196 = arith.mulf %7, %195 : vector<1x128xf32>
    %197 = arith.addf %193, %196 : vector<1x128xf32>
    %c46 = arith.constant 46 : index
    %198 = memref.load %arg1[%c46] : memref<128xf32, #tpu.memory_space<smem>>
    %199 = vector.broadcast %198 : f32 to vector<1x128xf32>
    %200 = arith.mulf %9, %199 : vector<1x128xf32>
    %201 = arith.addf %197, %200 : vector<1x128xf32>
    %c56 = arith.constant 56 : index
    %202 = memref.load %arg1[%c56] : memref<128xf32, #tpu.memory_space<smem>>
    %203 = vector.broadcast %202 : f32 to vector<1x128xf32>
    %204 = arith.mulf %11, %203 : vector<1x128xf32>
    %205 = arith.addf %201, %204 : vector<1x128xf32>
    %cst_23 = arith.constant 0.000000e+00 : f32
    %206 = vector.broadcast %cst_23 : f32 to vector<1x128xf32>
    %207 = arith.maximumf %205, %206 : vector<1x128xf32>
    %c7 = arith.constant 7 : index
    %208 = memref.load %arg1[%c7] : memref<128xf32, #tpu.memory_space<smem>>
    %209 = vector.broadcast %208 : f32 to vector<1x128xf32>
    %210 = arith.mulf %1, %209 : vector<1x128xf32>
    %c67 = arith.constant 67 : index
    %211 = memref.load %arg1[%c67] : memref<128xf32, #tpu.memory_space<smem>>
    %212 = vector.broadcast %211 : f32 to vector<1x128xf32>
    %213 = arith.addf %210, %212 : vector<1x128xf32>
    %c17 = arith.constant 17 : index
    %214 = memref.load %arg1[%c17] : memref<128xf32, #tpu.memory_space<smem>>
    %215 = vector.broadcast %214 : f32 to vector<1x128xf32>
    %216 = arith.mulf %3, %215 : vector<1x128xf32>
    %217 = arith.addf %213, %216 : vector<1x128xf32>
    %c27 = arith.constant 27 : index
    %218 = memref.load %arg1[%c27] : memref<128xf32, #tpu.memory_space<smem>>
    %219 = vector.broadcast %218 : f32 to vector<1x128xf32>
    %220 = arith.mulf %5, %219 : vector<1x128xf32>
    %221 = arith.addf %217, %220 : vector<1x128xf32>
    %c37 = arith.constant 37 : index
    %222 = memref.load %arg1[%c37] : memref<128xf32, #tpu.memory_space<smem>>
    %223 = vector.broadcast %222 : f32 to vector<1x128xf32>
    %224 = arith.mulf %7, %223 : vector<1x128xf32>
    %225 = arith.addf %221, %224 : vector<1x128xf32>
    %c47 = arith.constant 47 : index
    %226 = memref.load %arg1[%c47] : memref<128xf32, #tpu.memory_space<smem>>
    %227 = vector.broadcast %226 : f32 to vector<1x128xf32>
    %228 = arith.mulf %9, %227 : vector<1x128xf32>
    %229 = arith.addf %225, %228 : vector<1x128xf32>
    %c57 = arith.constant 57 : index
    %230 = memref.load %arg1[%c57] : memref<128xf32, #tpu.memory_space<smem>>
    %231 = vector.broadcast %230 : f32 to vector<1x128xf32>
    %232 = arith.mulf %11, %231 : vector<1x128xf32>
    %233 = arith.addf %229, %232 : vector<1x128xf32>
    %cst_24 = arith.constant 0.000000e+00 : f32
    %234 = vector.broadcast %cst_24 : f32 to vector<1x128xf32>
    %235 = arith.maximumf %233, %234 : vector<1x128xf32>
    %c8 = arith.constant 8 : index
    %236 = memref.load %arg1[%c8] : memref<128xf32, #tpu.memory_space<smem>>
    %237 = vector.broadcast %236 : f32 to vector<1x128xf32>
    %238 = arith.mulf %1, %237 : vector<1x128xf32>
    %c68 = arith.constant 68 : index
    %239 = memref.load %arg1[%c68] : memref<128xf32, #tpu.memory_space<smem>>
    %240 = vector.broadcast %239 : f32 to vector<1x128xf32>
    %241 = arith.addf %238, %240 : vector<1x128xf32>
    %c18 = arith.constant 18 : index
    %242 = memref.load %arg1[%c18] : memref<128xf32, #tpu.memory_space<smem>>
    %243 = vector.broadcast %242 : f32 to vector<1x128xf32>
    %244 = arith.mulf %3, %243 : vector<1x128xf32>
    %245 = arith.addf %241, %244 : vector<1x128xf32>
    %c28 = arith.constant 28 : index
    %246 = memref.load %arg1[%c28] : memref<128xf32, #tpu.memory_space<smem>>
    %247 = vector.broadcast %246 : f32 to vector<1x128xf32>
    %248 = arith.mulf %5, %247 : vector<1x128xf32>
    %249 = arith.addf %245, %248 : vector<1x128xf32>
    %c38 = arith.constant 38 : index
    %250 = memref.load %arg1[%c38] : memref<128xf32, #tpu.memory_space<smem>>
    %251 = vector.broadcast %250 : f32 to vector<1x128xf32>
    %252 = arith.mulf %7, %251 : vector<1x128xf32>
    %253 = arith.addf %249, %252 : vector<1x128xf32>
    %c48 = arith.constant 48 : index
    %254 = memref.load %arg1[%c48] : memref<128xf32, #tpu.memory_space<smem>>
    %255 = vector.broadcast %254 : f32 to vector<1x128xf32>
    %256 = arith.mulf %9, %255 : vector<1x128xf32>
    %257 = arith.addf %253, %256 : vector<1x128xf32>
    %c58 = arith.constant 58 : index
    %258 = memref.load %arg1[%c58] : memref<128xf32, #tpu.memory_space<smem>>
    %259 = vector.broadcast %258 : f32 to vector<1x128xf32>
    %260 = arith.mulf %11, %259 : vector<1x128xf32>
    %261 = arith.addf %257, %260 : vector<1x128xf32>
    %cst_25 = arith.constant 0.000000e+00 : f32
    %262 = vector.broadcast %cst_25 : f32 to vector<1x128xf32>
    %263 = arith.maximumf %261, %262 : vector<1x128xf32>
    %c9 = arith.constant 9 : index
    %264 = memref.load %arg1[%c9] : memref<128xf32, #tpu.memory_space<smem>>
    %265 = vector.broadcast %264 : f32 to vector<1x128xf32>
    %266 = arith.mulf %1, %265 : vector<1x128xf32>
    %c69 = arith.constant 69 : index
    %267 = memref.load %arg1[%c69] : memref<128xf32, #tpu.memory_space<smem>>
    %268 = vector.broadcast %267 : f32 to vector<1x128xf32>
    %269 = arith.addf %266, %268 : vector<1x128xf32>
    %c19 = arith.constant 19 : index
    %270 = memref.load %arg1[%c19] : memref<128xf32, #tpu.memory_space<smem>>
    %271 = vector.broadcast %270 : f32 to vector<1x128xf32>
    %272 = arith.mulf %3, %271 : vector<1x128xf32>
    %273 = arith.addf %269, %272 : vector<1x128xf32>
    %c29 = arith.constant 29 : index
    %274 = memref.load %arg1[%c29] : memref<128xf32, #tpu.memory_space<smem>>
    %275 = vector.broadcast %274 : f32 to vector<1x128xf32>
    %276 = arith.mulf %5, %275 : vector<1x128xf32>
    %277 = arith.addf %273, %276 : vector<1x128xf32>
    %c39 = arith.constant 39 : index
    %278 = memref.load %arg1[%c39] : memref<128xf32, #tpu.memory_space<smem>>
    %279 = vector.broadcast %278 : f32 to vector<1x128xf32>
    %280 = arith.mulf %7, %279 : vector<1x128xf32>
    %281 = arith.addf %277, %280 : vector<1x128xf32>
    %c49 = arith.constant 49 : index
    %282 = memref.load %arg1[%c49] : memref<128xf32, #tpu.memory_space<smem>>
    %283 = vector.broadcast %282 : f32 to vector<1x128xf32>
    %284 = arith.mulf %9, %283 : vector<1x128xf32>
    %285 = arith.addf %281, %284 : vector<1x128xf32>
    %c59 = arith.constant 59 : index
    %286 = memref.load %arg1[%c59] : memref<128xf32, #tpu.memory_space<smem>>
    %287 = vector.broadcast %286 : f32 to vector<1x128xf32>
    %288 = arith.mulf %11, %287 : vector<1x128xf32>
    %289 = arith.addf %285, %288 : vector<1x128xf32>
    %cst_26 = arith.constant 0.000000e+00 : f32
    %290 = vector.broadcast %cst_26 : f32 to vector<1x128xf32>
    %291 = arith.maximumf %289, %290 : vector<1x128xf32>
    %c70 = arith.constant 70 : index
    %292 = memref.load %arg1[%c70] : memref<128xf32, #tpu.memory_space<smem>>
    %293 = vector.broadcast %292 : f32 to vector<1x128xf32>
    %294 = arith.mulf %39, %293 : vector<1x128xf32>
    %c110 = arith.constant 110 : index
    %295 = memref.load %arg1[%c110] : memref<128xf32, #tpu.memory_space<smem>>
    %296 = vector.broadcast %295 : f32 to vector<1x128xf32>
    %297 = arith.addf %294, %296 : vector<1x128xf32>
    %c74 = arith.constant 74 : index
    %298 = memref.load %arg1[%c74] : memref<128xf32, #tpu.memory_space<smem>>
    %299 = vector.broadcast %298 : f32 to vector<1x128xf32>
    %300 = arith.mulf %67, %299 : vector<1x128xf32>
    %301 = arith.addf %297, %300 : vector<1x128xf32>
    %c78 = arith.constant 78 : index
    %302 = memref.load %arg1[%c78] : memref<128xf32, #tpu.memory_space<smem>>
    %303 = vector.broadcast %302 : f32 to vector<1x128xf32>
    %304 = arith.mulf %95, %303 : vector<1x128xf32>
    %305 = arith.addf %301, %304 : vector<1x128xf32>
    %c82 = arith.constant 82 : index
    %306 = memref.load %arg1[%c82] : memref<128xf32, #tpu.memory_space<smem>>
    %307 = vector.broadcast %306 : f32 to vector<1x128xf32>
    %308 = arith.mulf %123, %307 : vector<1x128xf32>
    %309 = arith.addf %305, %308 : vector<1x128xf32>
    %c86 = arith.constant 86 : index
    %310 = memref.load %arg1[%c86] : memref<128xf32, #tpu.memory_space<smem>>
    %311 = vector.broadcast %310 : f32 to vector<1x128xf32>
    %312 = arith.mulf %151, %311 : vector<1x128xf32>
    %313 = arith.addf %309, %312 : vector<1x128xf32>
    %c90 = arith.constant 90 : index
    %314 = memref.load %arg1[%c90] : memref<128xf32, #tpu.memory_space<smem>>
    %315 = vector.broadcast %314 : f32 to vector<1x128xf32>
    %316 = arith.mulf %179, %315 : vector<1x128xf32>
    %317 = arith.addf %313, %316 : vector<1x128xf32>
    %c94 = arith.constant 94 : index
    %318 = memref.load %arg1[%c94] : memref<128xf32, #tpu.memory_space<smem>>
    %319 = vector.broadcast %318 : f32 to vector<1x128xf32>
    %320 = arith.mulf %207, %319 : vector<1x128xf32>
    %321 = arith.addf %317, %320 : vector<1x128xf32>
    %c98 = arith.constant 98 : index
    %322 = memref.load %arg1[%c98] : memref<128xf32, #tpu.memory_space<smem>>
    %323 = vector.broadcast %322 : f32 to vector<1x128xf32>
    %324 = arith.mulf %235, %323 : vector<1x128xf32>
    %325 = arith.addf %321, %324 : vector<1x128xf32>
    %c102 = arith.constant 102 : index
    %326 = memref.load %arg1[%c102] : memref<128xf32, #tpu.memory_space<smem>>
    %327 = vector.broadcast %326 : f32 to vector<1x128xf32>
    %328 = arith.mulf %263, %327 : vector<1x128xf32>
    %329 = arith.addf %325, %328 : vector<1x128xf32>
    %c106 = arith.constant 106 : index
    %330 = memref.load %arg1[%c106] : memref<128xf32, #tpu.memory_space<smem>>
    %331 = vector.broadcast %330 : f32 to vector<1x128xf32>
    %332 = arith.mulf %291, %331 : vector<1x128xf32>
    %333 = arith.addf %329, %332 : vector<1x128xf32>
    %c71 = arith.constant 71 : index
    %334 = memref.load %arg1[%c71] : memref<128xf32, #tpu.memory_space<smem>>
    %335 = vector.broadcast %334 : f32 to vector<1x128xf32>
    %336 = arith.mulf %39, %335 : vector<1x128xf32>
    %c111 = arith.constant 111 : index
    %337 = memref.load %arg1[%c111] : memref<128xf32, #tpu.memory_space<smem>>
    %338 = vector.broadcast %337 : f32 to vector<1x128xf32>
    %339 = arith.addf %336, %338 : vector<1x128xf32>
    %c75 = arith.constant 75 : index
    %340 = memref.load %arg1[%c75] : memref<128xf32, #tpu.memory_space<smem>>
    %341 = vector.broadcast %340 : f32 to vector<1x128xf32>
    %342 = arith.mulf %67, %341 : vector<1x128xf32>
    %343 = arith.addf %339, %342 : vector<1x128xf32>
    %c79 = arith.constant 79 : index
    %344 = memref.load %arg1[%c79] : memref<128xf32, #tpu.memory_space<smem>>
    %345 = vector.broadcast %344 : f32 to vector<1x128xf32>
    %346 = arith.mulf %95, %345 : vector<1x128xf32>
    %347 = arith.addf %343, %346 : vector<1x128xf32>
    %c83 = arith.constant 83 : index
    %348 = memref.load %arg1[%c83] : memref<128xf32, #tpu.memory_space<smem>>
    %349 = vector.broadcast %348 : f32 to vector<1x128xf32>
    %350 = arith.mulf %123, %349 : vector<1x128xf32>
    %351 = arith.addf %347, %350 : vector<1x128xf32>
    %c87 = arith.constant 87 : index
    %352 = memref.load %arg1[%c87] : memref<128xf32, #tpu.memory_space<smem>>
    %353 = vector.broadcast %352 : f32 to vector<1x128xf32>
    %354 = arith.mulf %151, %353 : vector<1x128xf32>
    %355 = arith.addf %351, %354 : vector<1x128xf32>
    %c91 = arith.constant 91 : index
    %356 = memref.load %arg1[%c91] : memref<128xf32, #tpu.memory_space<smem>>
    %357 = vector.broadcast %356 : f32 to vector<1x128xf32>
    %358 = arith.mulf %179, %357 : vector<1x128xf32>
    %359 = arith.addf %355, %358 : vector<1x128xf32>
    %c95 = arith.constant 95 : index
    %360 = memref.load %arg1[%c95] : memref<128xf32, #tpu.memory_space<smem>>
    %361 = vector.broadcast %360 : f32 to vector<1x128xf32>
    %362 = arith.mulf %207, %361 : vector<1x128xf32>
    %363 = arith.addf %359, %362 : vector<1x128xf32>
    %c99 = arith.constant 99 : index
    %364 = memref.load %arg1[%c99] : memref<128xf32, #tpu.memory_space<smem>>
    %365 = vector.broadcast %364 : f32 to vector<1x128xf32>
    %366 = arith.mulf %235, %365 : vector<1x128xf32>
    %367 = arith.addf %363, %366 : vector<1x128xf32>
    %c103 = arith.constant 103 : index
    %368 = memref.load %arg1[%c103] : memref<128xf32, #tpu.memory_space<smem>>
    %369 = vector.broadcast %368 : f32 to vector<1x128xf32>
    %370 = arith.mulf %263, %369 : vector<1x128xf32>
    %371 = arith.addf %367, %370 : vector<1x128xf32>
    %c107 = arith.constant 107 : index
    %372 = memref.load %arg1[%c107] : memref<128xf32, #tpu.memory_space<smem>>
    %373 = vector.broadcast %372 : f32 to vector<1x128xf32>
    %374 = arith.mulf %291, %373 : vector<1x128xf32>
    %375 = arith.addf %371, %374 : vector<1x128xf32>
    %c72 = arith.constant 72 : index
    %376 = memref.load %arg1[%c72] : memref<128xf32, #tpu.memory_space<smem>>
    %377 = vector.broadcast %376 : f32 to vector<1x128xf32>
    %378 = arith.mulf %39, %377 : vector<1x128xf32>
    %c112 = arith.constant 112 : index
    %379 = memref.load %arg1[%c112] : memref<128xf32, #tpu.memory_space<smem>>
    %380 = vector.broadcast %379 : f32 to vector<1x128xf32>
    %381 = arith.addf %378, %380 : vector<1x128xf32>
    %c76 = arith.constant 76 : index
    %382 = memref.load %arg1[%c76] : memref<128xf32, #tpu.memory_space<smem>>
    %383 = vector.broadcast %382 : f32 to vector<1x128xf32>
    %384 = arith.mulf %67, %383 : vector<1x128xf32>
    %385 = arith.addf %381, %384 : vector<1x128xf32>
    %c80 = arith.constant 80 : index
    %386 = memref.load %arg1[%c80] : memref<128xf32, #tpu.memory_space<smem>>
    %387 = vector.broadcast %386 : f32 to vector<1x128xf32>
    %388 = arith.mulf %95, %387 : vector<1x128xf32>
    %389 = arith.addf %385, %388 : vector<1x128xf32>
    %c84 = arith.constant 84 : index
    %390 = memref.load %arg1[%c84] : memref<128xf32, #tpu.memory_space<smem>>
    %391 = vector.broadcast %390 : f32 to vector<1x128xf32>
    %392 = arith.mulf %123, %391 : vector<1x128xf32>
    %393 = arith.addf %389, %392 : vector<1x128xf32>
    %c88 = arith.constant 88 : index
    %394 = memref.load %arg1[%c88] : memref<128xf32, #tpu.memory_space<smem>>
    %395 = vector.broadcast %394 : f32 to vector<1x128xf32>
    %396 = arith.mulf %151, %395 : vector<1x128xf32>
    %397 = arith.addf %393, %396 : vector<1x128xf32>
    %c92 = arith.constant 92 : index
    %398 = memref.load %arg1[%c92] : memref<128xf32, #tpu.memory_space<smem>>
    %399 = vector.broadcast %398 : f32 to vector<1x128xf32>
    %400 = arith.mulf %179, %399 : vector<1x128xf32>
    %401 = arith.addf %397, %400 : vector<1x128xf32>
    %c96 = arith.constant 96 : index
    %402 = memref.load %arg1[%c96] : memref<128xf32, #tpu.memory_space<smem>>
    %403 = vector.broadcast %402 : f32 to vector<1x128xf32>
    %404 = arith.mulf %207, %403 : vector<1x128xf32>
    %405 = arith.addf %401, %404 : vector<1x128xf32>
    %c100 = arith.constant 100 : index
    %406 = memref.load %arg1[%c100] : memref<128xf32, #tpu.memory_space<smem>>
    %407 = vector.broadcast %406 : f32 to vector<1x128xf32>
    %408 = arith.mulf %235, %407 : vector<1x128xf32>
    %409 = arith.addf %405, %408 : vector<1x128xf32>
    %c104 = arith.constant 104 : index
    %410 = memref.load %arg1[%c104] : memref<128xf32, #tpu.memory_space<smem>>
    %411 = vector.broadcast %410 : f32 to vector<1x128xf32>
    %412 = arith.mulf %263, %411 : vector<1x128xf32>
    %413 = arith.addf %409, %412 : vector<1x128xf32>
    %c108 = arith.constant 108 : index
    %414 = memref.load %arg1[%c108] : memref<128xf32, #tpu.memory_space<smem>>
    %415 = vector.broadcast %414 : f32 to vector<1x128xf32>
    %416 = arith.mulf %291, %415 : vector<1x128xf32>
    %417 = arith.addf %413, %416 : vector<1x128xf32>
    %c73 = arith.constant 73 : index
    %418 = memref.load %arg1[%c73] : memref<128xf32, #tpu.memory_space<smem>>
    %419 = vector.broadcast %418 : f32 to vector<1x128xf32>
    %420 = arith.mulf %39, %419 : vector<1x128xf32>
    %c113 = arith.constant 113 : index
    %421 = memref.load %arg1[%c113] : memref<128xf32, #tpu.memory_space<smem>>
    %422 = vector.broadcast %421 : f32 to vector<1x128xf32>
    %423 = arith.addf %420, %422 : vector<1x128xf32>
    %c77 = arith.constant 77 : index
    %424 = memref.load %arg1[%c77] : memref<128xf32, #tpu.memory_space<smem>>
    %425 = vector.broadcast %424 : f32 to vector<1x128xf32>
    %426 = arith.mulf %67, %425 : vector<1x128xf32>
    %427 = arith.addf %423, %426 : vector<1x128xf32>
    %c81 = arith.constant 81 : index
    %428 = memref.load %arg1[%c81] : memref<128xf32, #tpu.memory_space<smem>>
    %429 = vector.broadcast %428 : f32 to vector<1x128xf32>
    %430 = arith.mulf %95, %429 : vector<1x128xf32>
    %431 = arith.addf %427, %430 : vector<1x128xf32>
    %c85 = arith.constant 85 : index
    %432 = memref.load %arg1[%c85] : memref<128xf32, #tpu.memory_space<smem>>
    %433 = vector.broadcast %432 : f32 to vector<1x128xf32>
    %434 = arith.mulf %123, %433 : vector<1x128xf32>
    %435 = arith.addf %431, %434 : vector<1x128xf32>
    %c89 = arith.constant 89 : index
    %436 = memref.load %arg1[%c89] : memref<128xf32, #tpu.memory_space<smem>>
    %437 = vector.broadcast %436 : f32 to vector<1x128xf32>
    %438 = arith.mulf %151, %437 : vector<1x128xf32>
    %439 = arith.addf %435, %438 : vector<1x128xf32>
    %c93 = arith.constant 93 : index
    %440 = memref.load %arg1[%c93] : memref<128xf32, #tpu.memory_space<smem>>
    %441 = vector.broadcast %440 : f32 to vector<1x128xf32>
    %442 = arith.mulf %179, %441 : vector<1x128xf32>
    %443 = arith.addf %439, %442 : vector<1x128xf32>
    %c97 = arith.constant 97 : index
    %444 = memref.load %arg1[%c97] : memref<128xf32, #tpu.memory_space<smem>>
    %445 = vector.broadcast %444 : f32 to vector<1x128xf32>
    %446 = arith.mulf %207, %445 : vector<1x128xf32>
    %447 = arith.addf %443, %446 : vector<1x128xf32>
    %c101 = arith.constant 101 : index
    %448 = memref.load %arg1[%c101] : memref<128xf32, #tpu.memory_space<smem>>
    %449 = vector.broadcast %448 : f32 to vector<1x128xf32>
    %450 = arith.mulf %235, %449 : vector<1x128xf32>
    %451 = arith.addf %447, %450 : vector<1x128xf32>
    %c105 = arith.constant 105 : index
    %452 = memref.load %arg1[%c105] : memref<128xf32, #tpu.memory_space<smem>>
    %453 = vector.broadcast %452 : f32 to vector<1x128xf32>
    %454 = arith.mulf %263, %453 : vector<1x128xf32>
    %455 = arith.addf %451, %454 : vector<1x128xf32>
    %c109 = arith.constant 109 : index
    %456 = memref.load %arg1[%c109] : memref<128xf32, #tpu.memory_space<smem>>
    %457 = vector.broadcast %456 : f32 to vector<1x128xf32>
    %458 = arith.mulf %291, %457 : vector<1x128xf32>
    %459 = arith.addf %455, %458 : vector<1x128xf32>
    %460 = arith.maximumf %333, %375 : vector<1x128xf32>
    %461 = arith.maximumf %417, %459 : vector<1x128xf32>
    %462 = arith.maximumf %460, %461 : vector<1x128xf32>
    %463 = arith.subf %333, %462 : vector<1x128xf32>
    %464 = math.exp %463 : vector<1x128xf32>
    %465 = arith.subf %375, %462 : vector<1x128xf32>
    %466 = math.exp %465 : vector<1x128xf32>
    %467 = arith.subf %417, %462 : vector<1x128xf32>
    %468 = math.exp %467 : vector<1x128xf32>
    %469 = arith.subf %459, %462 : vector<1x128xf32>
    %470 = math.exp %469 : vector<1x128xf32>
    %471 = arith.addf %464, %466 : vector<1x128xf32>
    %472 = arith.addf %468, %470 : vector<1x128xf32>
    %473 = arith.addf %471, %472 : vector<1x128xf32>
    %474 = tpu.reciprocal %473 : vector<1x128xf32> -> vector<1x128xf32>
    %475 = arith.mulf %464, %474 : vector<1x128xf32>
    %c0_27 = arith.constant 0 : index
    %c0_28 = arith.constant 0 : index
    %c0_29 = arith.constant 0 : index
    %476 = vector.load %arg3[%c0_27, %c0_28, %c0_29] : memref<4x1x128xf32, #tpu.memory_space<vmem>>, vector<1x1x128xf32>
    %477 = vector.shape_cast %476 : vector<1x1x128xf32> to vector<1x128xf32>
    %478 = vector.shape_cast %475 : vector<1x128xf32> to vector<1x1x128xf32>
    tpu.vector_store %arg3[%c0_27, %c0_28, %c0_29], %478 {strides = array<i32>} : memref<4x1x128xf32, #tpu.memory_space<vmem>>, vector<1x1x128xf32>,
    %479 = arith.mulf %466, %474 : vector<1x128xf32>
    %c1_30 = arith.constant 1 : index
    %c0_31 = arith.constant 0 : index
    %c0_32 = arith.constant 0 : index
    %480 = vector.load %arg3[%c1_30, %c0_31, %c0_32] : memref<4x1x128xf32, #tpu.memory_space<vmem>>, vector<1x1x128xf32>
    %481 = vector.shape_cast %480 : vector<1x1x128xf32> to vector<1x128xf32>
    %482 = vector.shape_cast %479 : vector<1x128xf32> to vector<1x1x128xf32>
    tpu.vector_store %arg3[%c1_30, %c0_31, %c0_32], %482 {strides = array<i32>} : memref<4x1x128xf32, #tpu.memory_space<vmem>>, vector<1x1x128xf32>,
    %483 = arith.mulf %468, %474 : vector<1x128xf32>
    %c2_33 = arith.constant 2 : index
    %c0_34 = arith.constant 0 : index
    %c0_35 = arith.constant 0 : index
    %484 = vector.load %arg3[%c2_33, %c0_34, %c0_35] : memref<4x1x128xf32, #tpu.memory_space<vmem>>, vector<1x1x128xf32>
    %485 = vector.shape_cast %484 : vector<1x1x128xf32> to vector<1x128xf32>
    %486 = vector.shape_cast %483 : vector<1x128xf32> to vector<1x1x128xf32>
    tpu.vector_store %arg3[%c2_33, %c0_34, %c0_35], %486 {strides = array<i32>} : memref<4x1x128xf32, #tpu.memory_space<vmem>>, vector<1x1x128xf32>,
    %487 = arith.mulf %470, %474 : vector<1x128xf32>
    %c3_36 = arith.constant 3 : index
    %c0_37 = arith.constant 0 : index
    %c0_38 = arith.constant 0 : index
    %488 = vector.load %arg3[%c3_36, %c0_37, %c0_38] : memref<4x1x128xf32, #tpu.memory_space<vmem>>, vector<1x1x128xf32>
    %489 = vector.shape_cast %488 : vector<1x1x128xf32> to vector<1x128xf32>
    %490 = vector.shape_cast %487 : vector<1x128xf32> to vector<1x1x128xf32>
    tpu.vector_store %arg3[%c3_36, %c0_37, %c0_38], %490 {strides = array<i32>} : memref<4x1x128xf32, #tpu.memory_space<vmem>>, vector<1x1x128xf32>,
    return
  }
  func.func @transform_0(%arg0: i32) -> i32 {
    %c0_i32 = arith.constant 0 : i32
    %c0_i32_0 = arith.constant 0 : i32
    return %c0_i32 : i32
  }
  func.func @transform_1(%arg0: i32) -> (i32, i32, i32) {
    %c0_i32 = arith.constant 0 : i32
    %c0_i32_0 = arith.constant 0 : i32
    %c0_i32_1 = arith.constant 0 : i32
    return %c0_i32, %arg0, %c0_i32_0 : i32, i32, i32
  }
  func.func @transform_2(%arg0: i32) -> (i32, i32, i32) {
    %c0_i32 = arith.constant 0 : i32
    %c0_i32_0 = arith.constant 0 : i32
    %c0_i32_1 = arith.constant 0 : i32
    return %c0_i32, %arg0, %c0_i32_0 : i32, i32, i32
  }
}

</mosaic_0001>

<llo_original>
// kernel: model_1_forward.1
$region0: #{model_1_forward.1}
  #allocation0 [shape = 'u32[]', space=smem, size = 0x4, offset = 0x4, fixed_abs, tag = 'smem constant byte address 0x4 - core index']
  #allocation1 [shape = 'u32[72,128]{1,0:T(1,128)}', space=vmem, size = 0x9000, scoped, tag = 'internal scratch']
  %s0 = inlined_call_operand.vmem [shape: f32[128], index: 0, kind: input, shape index: {}]
  %s1 = inlined_call_operand.vmem [shape: f32[6,1,128], index: 1, kind: input, shape index: {}]
  %s2 = inlined_call_operand.vmem [shape: f32[4,1,128], index: 2, kind: output, shape index: {}]
  %s3 = sld [smem:[#allocation0]]
  $region22: #{model_1_forward.1} parent=0
    _
  %s5 = ssub.s32 1, %s3
  %s6 = scalar_select 0, %s5, %s3
  $region1: #{model_1_forward.1} parent=0
    #allocation2 [shape = 'u8[512]{0}', space=smem, size = 0x200, scoped, tag = 'input window, operand 0, single buffered']
    #allocation3 [shape = 's32[1]{0}', space=sflag, size = 0x4, scoped, tag = 'scoped memory for model_1_forward.1']
    %7 = vsyncpa [#allocation3], 0
    // Predicated region
    $region2: #{model_1_forward.1} parent=1 // pred_check
      _
    $region3: #{model_1_forward.1} parent=1 // pred_check_branch
      %9 = sbr.rel (0) target = $region5
    $region4: #{model_1_forward.1} parent=1 // pred_region
      %11 = vsyncadd [#allocation3], 0
      %s13 = sshll.u32 %s0, 4
      %s14 = int_to_ptr.vmem [resolvable:$true] %s13
      %16 = dma.vmem_to_smem %s14, 16, [#allocation2], [#allocation3]
    $region5: #{model_1_forward.1} parent=1 // pred_fallthru
      _
    // Predicated region
    $region6: #{model_1_forward.1} parent=1 // pred_check
      _
    $region7: #{model_1_forward.1} parent=1 // pred_check_branch
      %18 = sbr.rel (0) target = $region9
    $region8: #{model_1_forward.1} parent=1 // pred_region
      _
    $region9: #{model_1_forward.1} parent=1 // pred_fallthru
      _
    // Predicated region
    $region10: #{model_1_forward.1} parent=1 // pred_check
      _
    $region11: #{model_1_forward.1} parent=1 // pred_check_branch
      %20 = sbr.rel (0) target = $region13
    $region12: #{model_1_forward.1} parent=1 // pred_region
      %22 = dma.done [#allocation3], 16
    $region13: #{model_1_forward.1} parent=1 // pred_fallthru
      _
    %23 = sfence
    %v24 = vld [vmem:[%s1] sm:$0x1]
    %s25 = scalar_lea.vmem %s1, 1
    %v26 = vld [vmem:[%s25] sm:$0x1]
    %s27 = scalar_lea.vmem %s1, 2
    %v28 = vld [vmem:[%s27] sm:$0x1]
    %s29 = scalar_lea.vmem %s1, 3
    %v30 = vld [vmem:[%s29] sm:$0x1]
    %s31 = scalar_lea.vmem %s1, 4
    %v32 = vld [vmem:[%s31] sm:$0x1]
    %s33 = scalar_lea.vmem %s1, 5
    %v34 = vld [vmem:[%s33] sm:$0x1]
    %s35 = sld [smem:[#allocation2]]
    %v36 = vstv %s35
    %v37 = vmul.f32 %v24, %v36
    %s38 = sld [smem:[#allocation2 + $0x3c]]
    %v39 = vstv %s38
    %v40 = vadd.f32 %v37, %v39
    %s41 = sld [smem:[#allocation2 + $0xa]]
    %v42 = vstv %s41
    %v43 = vmul.f32 %v26, %v42
    %v44 = vadd.f32 %v40, %v43
    %s45 = sld [smem:[#allocation2 + $0x14]]
    %v46 = vstv %s45
    %v47 = vmul.f32 %v28, %v46
    %v48 = vadd.f32 %v44, %v47
    %s49 = sld [smem:[#allocation2 + $0x1e]]
    %v50 = vstv %s49
    %v51 = vmul.f32 %v30, %v50
    %v52 = vadd.f32 %v48, %v51
    %s53 = sld [smem:[#allocation2 + $0x28]]
    %v54 = vstv %s53
    %v55 = vmul.f32 %v32, %v54
    %v56 = vadd.f32 %v52, %v55
    %s57 = sld [smem:[#allocation2 + $0x32]]
    %v58 = vstv %s57
    %v59 = vmul.f32 %v34, %v58
    %v60 = vadd.f32 %v56, %v59
    %v61 = vmax.f32 %v60, 0.0
    %s62 = sld [smem:[#allocation2 + $0x1]]
    %v63 = vstv %s62
    %v64 = vmul.f32 %v24, %v63
    %s65 = sld [smem:[#allocation2 + $0x3d]]
    %v66 = vstv %s65
    %v67 = vadd.f32 %v64, %v66
    %s68 = sld [smem:[#allocation2 + $0xb]]
    %v69 = vstv %s68
    %v70 = vmul.f32 %v26, %v69
    %v71 = vadd.f32 %v67, %v70
    %s72 = sld [smem:[#allocation2 + $0x15]]
    %v73 = vstv %s72
    %v74 = vmul.f32 %v28, %v73
    %v75 = vadd.f32 %v71, %v74
    %s76 = sld [smem:[#allocation2 + $0x1f]]
    %v77 = vstv %s76
    %v78 = vmul.f32 %v30, %v77
    %v79 = vadd.f32 %v75, %v78
    %s80 = sld [smem:[#allocation2 + $0x29]]
    %v81 = vstv %s80
    %v82 = vmul.f32 %v32, %v81
    %v83 = vadd.f32 %v79, %v82
    %s84 = sld [smem:[#allocation2 + $0x33]]
    %v85 = vstv %s84
    %v86 = vmul.f32 %v34, %v85
    %v87 = vadd.f32 %v83, %v86
    %v88 = vmax.f32 %v87, 0.0
    %s89 = sld [smem:[#allocation2 + $0x2]]
    %v90 = vstv %s89
    %v91 = vmul.f32 %v24, %v90
    %s92 = sld [smem:[#allocation2 + $0x3e]]
    %v93 = vstv %s92
    %v94 = vadd.f32 %v91, %v93
    %s95 = sld [smem:[#allocation2 + $0xc]]
    %v96 = vstv %s95
    %v97 = vmul.f32 %v26, %v96
    %v98 = vadd.f32 %v94, %v97
    %s99 = sld [smem:[#allocation2 + $0x16]]
    %v100 = vstv %s99
    %v101 = vmul.f32 %v28, %v100
    %v102 = vadd.f32 %v98, %v101
    %s103 = sld [smem:[#allocation2 + $0x20]]
    %v104 = vstv %s103
    %v105 = vmul.f32 %v30, %v104
    %v106 = vadd.f32 %v102, %v105
    %s107 = sld [smem:[#allocation2 + $0x2a]]
    %v108 = vstv %s107
    %v109 = vmul.f32 %v32, %v108
    %v110 = vadd.f32 %v106, %v109
    %s111 = sld [smem:[#allocation2 + $0x34]]
    %v112 = vstv %s111
    %v113 = vmul.f32 %v34, %v112
    %v114 = vadd.f32 %v110, %v113
    %v115 = vmax.f32 %v114, 0.0
    %s116 = sld [smem:[#allocation2 + $0x3]]
    %v117 = vstv %s116
    %v118 = vmul.f32 %v24, %v117
    %s119 = sld [smem:[#allocation2 + $0x3f]]
    %v120 = vstv %s119
    %v121 = vadd.f32 %v118, %v120
    %s122 = sld [smem:[#allocation2 + $0xd]]
    %v123 = vstv %s122
    %v124 = vmul.f32 %v26, %v123
    %v125 = vadd.f32 %v121, %v124
    %s126 = sld [smem:[#allocation2 + $0x17]]
    %v127 = vstv %s126
    %v128 = vmul.f32 %v28, %v127
    %v129 = vadd.f32 %v125, %v128
    %s130 = sld [smem:[#allocation2 + $0x21]]
    %v131 = vstv %s130
    %v132 = vmul.f32 %v30, %v131
    %v133 = vadd.f32 %v129, %v132
    %s134 = sld [smem:[#allocation2 + $0x2b]]
    %v135 = vstv %s134
    %v136 = vmul.f32 %v32, %v135
    %v137 = vadd.f32 %v133, %v136
    %s138 = sld [smem:[#allocation2 + $0x35]]
    %v139 = vstv %s138
    %v140 = vmul.f32 %v34, %v139
    %v141 = vadd.f32 %v137, %v140
    %v142 = vmax.f32 %v141, 0.0
    %s143 = sld [smem:[#allocation2 + $0x4]]
    %v144 = vstv %s143
    %v145 = vmul.f32 %v24, %v144
    %s146 = sld [smem:[#allocation2 + $0x40]]
    %v147 = vstv %s146
    %v148 = vadd.f32 %v145, %v147
    %s149 = sld [smem:[#allocation2 + $0xe]]
    %v150 = vstv %s149
    %v151 = vmul.f32 %v26, %v150
    %v152 = vadd.f32 %v148, %v151
    %s153 = sld [smem:[#allocation2 + $0x18]]
    %v154 = vstv %s153
    %v155 = vmul.f32 %v28, %v154
    %v156 = vadd.f32 %v152, %v155
    %s157 = sld [smem:[#allocation2 + $0x22]]
    %v158 = vstv %s157
    %v159 = vmul.f32 %v30, %v158
    %v160 = vadd.f32 %v156, %v159
    %s161 = sld [smem:[#allocation2 + $0x2c]]
    %v162 = vstv %s161
    %v163 = vmul.f32 %v32, %v162
    %v164 = vadd.f32 %v160, %v163
    %s165 = sld [smem:[#allocation2 + $0x36]]
    %v166 = vstv %s165
    %v167 = vmul.f32 %v34, %v166
    %v168 = vadd.f32 %v164, %v167
    %v169 = vmax.f32 %v168, 0.0
    %s170 = sld [smem:[#allocation2 + $0x5]]
    %v171 = vstv %s170
    %v172 = vmul.f32 %v24, %v171
    %s173 = sld [smem:[#allocation2 + $0x41]]
    %v174 = vstv %s173
    %v175 = vadd.f32 %v172, %v174
    %s176 = sld [smem:[#allocation2 + $0xf]]
    %v177 = vstv %s176
    %v178 = vmul.f32 %v26, %v177
    %v179 = vadd.f32 %v175, %v178
    %s180 = sld [smem:[#allocation2 + $0x19]]
    %v181 = vstv %s180
    %v182 = vmul.f32 %v28, %v181
    %v183 = vadd.f32 %v179, %v182
    %s184 = sld [smem:[#allocation2 + $0x23]]
    %v185 = vstv %s184
    %v186 = vmul.f32 %v30, %v185
    %v187 = vadd.f32 %v183, %v186
    %s188 = sld [smem:[#allocation2 + $0x2d]]
    %v189 = vstv %s188
    %v190 = vmul.f32 %v32, %v189
    %v191 = vadd.f32 %v187, %v190
    %s192 = sld [smem:[#allocation2 + $0x37]]
    %v193 = vstv %s192
    %v194 = vmul.f32 %v34, %v193
    %v195 = vadd.f32 %v191, %v194
    %v196 = vmax.f32 %v195, 0.0
    %s197 = sld [smem:[#allocation2 + $0x6]]
    %v198 = vstv %s197
    %v199 = vmul.f32 %v24, %v198
    %s200 = sld [smem:[#allocation2 + $0x42]]
    %v201 = vstv %s200
    %v202 = vadd.f32 %v199, %v201
    %s203 = sld [smem:[#allocation2 + $0x10]]
    %v204 = vstv %s203
    %v205 = vmul.f32 %v26, %v204
    %v206 = vadd.f32 %v202, %v205
    %s207 = sld [smem:[#allocation2 + $0x1a]]
    %v208 = vstv %s207
    %v209 = vmul.f32 %v28, %v208
    %v210 = vadd.f32 %v206, %v209
    %s211 = sld [smem:[#allocation2 + $0x24]]
    %v212 = vstv %s211
    %v213 = vmul.f32 %v30, %v212
    %v214 = vadd.f32 %v210, %v213
    %s215 = sld [smem:[#allocation2 + $0x2e]]
    %v216 = vstv %s215
    %v217 = vmul.f32 %v32, %v216
    %v218 = vadd.f32 %v214, %v217
    %s219 = sld [smem:[#allocation2 + $0x38]]
    %v220 = vstv %s219
    %v221 = vmul.f32 %v34, %v220
    %v222 = vadd.f32 %v218, %v221
    %v223 = vmax.f32 %v222, 0.0
    %s224 = sld [smem:[#allocation2 + $0x7]]
    %v225 = vstv %s224
    %v226 = vmul.f32 %v24, %v225
    %s227 = sld [smem:[#allocation2 + $0x43]]
    %v228 = vstv %s227
    %v229 = vadd.f32 %v226, %v228
    %s230 = sld [smem:[#allocation2 + $0x11]]
    %v231 = vstv %s230
    %v232 = vmul.f32 %v26, %v231
    %v233 = vadd.f32 %v229, %v232
    %s234 = sld [smem:[#allocation2 + $0x1b]]
    %v235 = vstv %s234
    %v236 = vmul.f32 %v28, %v235
    %v237 = vadd.f32 %v233, %v236
    %s238 = sld [smem:[#allocation2 + $0x25]]
    %v239 = vstv %s238
    %v240 = vmul.f32 %v30, %v239
    %v241 = vadd.f32 %v237, %v240
    %s242 = sld [smem:[#allocation2 + $0x2f]]
    %v243 = vstv %s242
    %v244 = vmul.f32 %v32, %v243
    %v245 = vadd.f32 %v241, %v244
    %s246 = sld [smem:[#allocation2 + $0x39]]
    %v247 = vstv %s246
    %v248 = vmul.f32 %v34, %v247
    %v249 = vadd.f32 %v245, %v248
    %v250 = vmax.f32 %v249, 0.0
    %s251 = sld [smem:[#allocation2 + $0x8]]
    %v252 = vstv %s251
    %v253 = vmul.f32 %v24, %v252
    %s254 = sld [smem:[#allocation2 + $0x44]]
    %v255 = vstv %s254
    %v256 = vadd.f32 %v253, %v255
    %s257 = sld [smem:[#allocation2 + $0x12]]
    %v258 = vstv %s257
    %v259 = vmul.f32 %v26, %v258
    %v260 = vadd.f32 %v256, %v259
    %s261 = sld [smem:[#allocation2 + $0x1c]]
    %v262 = vstv %s261
    %v263 = vmul.f32 %v28, %v262
    %v264 = vadd.f32 %v260, %v263
    %s265 = sld [smem:[#allocation2 + $0x26]]
    %v266 = vstv %s265
    %v267 = vmul.f32 %v30, %v266
    %v268 = vadd.f32 %v264, %v267
    %s269 = sld [smem:[#allocation2 + $0x30]]
    %v270 = vstv %s269
    %v271 = vmul.f32 %v32, %v270
    %v272 = vadd.f32 %v268, %v271
    %s273 = sld [smem:[#allocation2 + $0x3a]]
    %v274 = vstv %s273
    %v275 = vmul.f32 %v34, %v274
    %v276 = vadd.f32 %v272, %v275
    %v277 = vmax.f32 %v276, 0.0
    %s278 = sld [smem:[#allocation2 + $0x9]]
    %v279 = vstv %s278
    %v280 = vmul.f32 %v24, %v279
    %s281 = sld [smem:[#allocation2 + $0x45]]
    %v282 = vstv %s281
    %v283 = vadd.f32 %v280, %v282
    %s284 = sld [smem:[#allocation2 + $0x13]]
    %v285 = vstv %s284
    %v286 = vmul.f32 %v26, %v285
    %v287 = vadd.f32 %v283, %v286
    %s288 = sld [smem:[#allocation2 + $0x1d]]
    %v289 = vstv %s288
    %v290 = vmul.f32 %v28, %v289
    %v291 = vadd.f32 %v287, %v290
    %s292 = sld [smem:[#allocation2 + $0x27]]
    %v293 = vstv %s292
    %v294 = vmul.f32 %v30, %v293
    %v295 = vadd.f32 %v291, %v294
    %s296 = sld [smem:[#allocation2 + $0x31]]
    %v297 = vstv %s296
    %v298 = vmul.f32 %v32, %v297
    %v299 = vadd.f32 %v295, %v298
    %s300 = sld [smem:[#allocation2 + $0x3b]]
    %v301 = vstv %s300
    %v302 = vmul.f32 %v34, %v301
    %v303 = vadd.f32 %v299, %v302
    %v304 = vmax.f32 %v303, 0.0
    %s305 = sld [smem:[#allocation2 + $0x46]]
    %v306 = vstv %s305
    %v307 = vmul.f32 %v61, %v306
    %s308 = sld [smem:[#allocation2 + $0x6e]]
    %v309 = vstv %s308
    %v310 = vadd.f32 %v307, %v309
    %s311 = sld [smem:[#allocation2 + $0x4a]]
    %v312 = vstv %s311
    %v313 = vmul.f32 %v88, %v312
    %v314 = vadd.f32 %v310, %v313
    %s315 = sld [smem:[#allocation2 + $0x4e]]
    %v316 = vstv %s315
    %v317 = vmul.f32 %v115, %v316
    %v318 = vadd.f32 %v314, %v317
    %s319 = sld [smem:[#allocation2 + $0x52]]
    %v320 = vstv %s319
    %v321 = vmul.f32 %v142, %v320
    %v322 = vadd.f32 %v318, %v321
    %s323 = sld [smem:[#allocation2 + $0x56]]
    %v324 = vstv %s323
    %v325 = vmul.f32 %v169, %v324
    %v326 = vadd.f32 %v322, %v325
    %s327 = sld [smem:[#allocation2 + $0x5a]]
    %v328 = vstv %s327
    %v329 = vmul.f32 %v196, %v328
    %v330 = vadd.f32 %v326, %v329
    %s331 = sld [smem:[#allocation2 + $0x5e]]
    %v332 = vstv %s331
    %v333 = vmul.f32 %v223, %v332
    %v334 = vadd.f32 %v330, %v333
    %s335 = sld [smem:[#allocation2 + $0x62]]
    %v336 = vstv %s335
    %v337 = vmul.f32 %v250, %v336
    %v338 = vadd.f32 %v334, %v337
    %s339 = sld [smem:[#allocation2 + $0x66]]
    %v340 = vstv %s339
    %v341 = vmul.f32 %v277, %v340
    %v342 = vadd.f32 %v338, %v341
    %s343 = sld [smem:[#allocation2 + $0x6a]]
    %v344 = vstv %s343
    %v345 = vmul.f32 %v304, %v344
    %v346 = vadd.f32 %v342, %v345
    %s347 = sld [smem:[#allocation2 + $0x47]]
    %v348 = vstv %s347
    %v349 = vmul.f32 %v61, %v348
    %s350 = sld [smem:[#allocation2 + $0x6f]]
    %v351 = vstv %s350
    %v352 = vadd.f32 %v349, %v351
    %s353 = sld [smem:[#allocation2 + $0x4b]]
    %v354 = vstv %s353
    %v355 = vmul.f32 %v88, %v354
    %v356 = vadd.f32 %v352, %v355
    %s357 = sld [smem:[#allocation2 + $0x4f]]
    %v358 = vstv %s357
    %v359 = vmul.f32 %v115, %v358
    %v360 = vadd.f32 %v356, %v359
    %s361 = sld [smem:[#allocation2 + $0x53]]
    %v362 = vstv %s361
    %v363 = vmul.f32 %v142, %v362
    %v364 = vadd.f32 %v360, %v363
    %s365 = sld [smem:[#allocation2 + $0x57]]
    %v366 = vstv %s365
    %v367 = vmul.f32 %v169, %v366
    %v368 = vadd.f32 %v364, %v367
    %s369 = sld [smem:[#allocation2 + $0x5b]]
    %v370 = vstv %s369
    %v371 = vmul.f32 %v196, %v370
    %v372 = vadd.f32 %v368, %v371
    %s373 = sld [smem:[#allocation2 + $0x5f]]
    %v374 = vstv %s373
    %v375 = vmul.f32 %v223, %v374
    %v376 = vadd.f32 %v372, %v375
    %s377 = sld [smem:[#allocation2 + $0x63]]
    %v378 = vstv %s377
    %v379 = vmul.f32 %v250, %v378
    %v380 = vadd.f32 %v376, %v379
    %s381 = sld [smem:[#allocation2 + $0x67]]
    %v382 = vstv %s381
    %v383 = vmul.f32 %v277, %v382
    %v384 = vadd.f32 %v380, %v383
    %s385 = sld [smem:[#allocation2 + $0x6b]]
    %v386 = vstv %s385
    %v387 = vmul.f32 %v304, %v386
    %v388 = vadd.f32 %v384, %v387
    %s389 = sld [smem:[#allocation2 + $0x48]]
    %v390 = vstv %s389
    %v391 = vmul.f32 %v61, %v390
    %s392 = sld [smem:[#allocation2 + $0x70]]
    %v393 = vstv %s392
    %v394 = vadd.f32 %v391, %v393
    %s395 = sld [smem:[#allocation2 + $0x4c]]
    %v396 = vstv %s395
    %v397 = vmul.f32 %v88, %v396
    %v398 = vadd.f32 %v394, %v397
    %s399 = sld [smem:[#allocation2 + $0x50]]
    %v400 = vstv %s399
    %v401 = vmul.f32 %v115, %v400
    %v402 = vadd.f32 %v398, %v401
    %s403 = sld [smem:[#allocation2 + $0x54]]
    %v404 = vstv %s403
    %v405 = vmul.f32 %v142, %v404
    %v406 = vadd.f32 %v402, %v405
    %s407 = sld [smem:[#allocation2 + $0x58]]
    %v408 = vstv %s407
    %v409 = vmul.f32 %v169, %v408
    %v410 = vadd.f32 %v406, %v409
    %s411 = sld [smem:[#allocation2 + $0x5c]]
    %v412 = vstv %s411
    %v413 = vmul.f32 %v196, %v412
    %v414 = vadd.f32 %v410, %v413
    %s415 = sld [smem:[#allocation2 + $0x60]]
    %v416 = vstv %s415
    %v417 = vmul.f32 %v223, %v416
    %v418 = vadd.f32 %v414, %v417
    %s419 = sld [smem:[#allocation2 + $0x64]]
    %v420 = vstv %s419
    %v421 = vmul.f32 %v250, %v420
    %v422 = vadd.f32 %v418, %v421
    %s423 = sld [smem:[#allocation2 + $0x68]]
    %v424 = vstv %s423
    %v425 = vmul.f32 %v277, %v424
    %v426 = vadd.f32 %v422, %v425
    %s427 = sld [smem:[#allocation2 + $0x6c]]
    %v428 = vstv %s427
    %v429 = vmul.f32 %v304, %v428
    %v430 = vadd.f32 %v426, %v429
    %s431 = sld [smem:[#allocation2 + $0x49]]
    %v432 = vstv %s431
    %v433 = vmul.f32 %v61, %v432
    %s434 = sld [smem:[#allocation2 + $0x71]]
    %v435 = vstv %s434
    %v436 = vadd.f32 %v433, %v435
    %s437 = sld [smem:[#allocation2 + $0x4d]]
    %v438 = vstv %s437
    %v439 = vmul.f32 %v88, %v438
    %v440 = vadd.f32 %v436, %v439
    %s441 = sld [smem:[#allocation2 + $0x51]]
    %v442 = vstv %s441
    %v443 = vmul.f32 %v115, %v442
    %v444 = vadd.f32 %v440, %v443
    %s445 = sld [smem:[#allocation2 + $0x55]]
    %v446 = vstv %s445
    %v447 = vmul.f32 %v142, %v446
    %v448 = vadd.f32 %v444, %v447
    %s449 = sld [smem:[#allocation2 + $0x59]]
    %v450 = vstv %s449
    %v451 = vmul.f32 %v169, %v450
    %v452 = vadd.f32 %v448, %v451
    %s453 = sld [smem:[#allocation2 + $0x5d]]
    %v454 = vstv %s453
    %v455 = vmul.f32 %v196, %v454
    %v456 = vadd.f32 %v452, %v455
    %s457 = sld [smem:[#allocation2 + $0x61]]
    %v458 = vstv %s457
    %v459 = vmul.f32 %v223, %v458
    %v460 = vadd.f32 %v456, %v459
    %s461 = sld [smem:[#allocation2 + $0x65]]
    %v462 = vstv %s461
    %v463 = vmul.f32 %v250, %v462
    %v464 = vadd.f32 %v460, %v463
    %s465 = sld [smem:[#allocation2 + $0x69]]
    %v466 = vstv %s465
    %v467 = vmul.f32 %v277, %v466
    %v468 = vadd.f32 %v464, %v467
    %s469 = sld [smem:[#allocation2 + $0x6d]]
    %v470 = vstv %s469
    %v471 = vmul.f32 %v304, %v470
    %v472 = vadd.f32 %v468, %v471
    %v473 = vmax.f32 %v346, %v388
    %v474 = vmax.f32 %v430, %v472
    %v475 = vmax.f32 %v473, %v474
    %v476 = vsub.f32 %v346, %v475
    %v477 = vmul.f32 %v476, 1.442695
    %v478 = vpow.pop %v477
    %v479 = vsub.f32 %v388, %v475
    %v480 = vmul.f32 %v479, 1.442695
    %v481 = vpow.pop %v480
    %v482 = vsub.f32 %v430, %v475
    %v483 = vmul.f32 %v482, 1.442695
    %v484 = vpow.pop %v483
    %v485 = vsub.f32 %v472, %v475
    %v486 = vmul.f32 %v485, 1.442695
    %v487 = vpow.pop %v486
    %v488 = vadd.f32 %v478, %v481
    %v489 = vadd.f32 %v484, %v487
    %v490 = vadd.f32 %v488, %v489
    %v491 = vrcp.pop %v490
    %v492 = vmul.f32 %v490, %v491
    %v493 = vsub.f32 1.0, %v492
    %v494 = vmul.f32 %v491, %v493
    %v495 = vadd.f32 %v491, %v494
    %vm496 = vweird.f32 %v490
    %vm497 = vweird.f32 %v491
    %vm498 = vmor %vm496, %vm497
    %v499 = vsel %vm498, %v491, %v495
    %v500 = vand.u32 2147483647, %v490
    %vm501 = vcmp.eq.f32.partialorder %v500, 8.507059e+37
    %v502 = vand.u32 %v490, 2147483648
    %v503 = vor.u32 1.1754944e-38, %v502
    %v504 = vsel %vm501, %v503, %v499
    %v505 = vmul.f32 %v478, %v504
    %506 = vst [vmem:[%s2] sm:$0x1] %v505
    %v507 = vmul.f32 %v481, %v504
    %s508 = scalar_lea.vmem %s2, 1
    %509 = vst [vmem:[%s508] sm:$0x1] %v507
    %v510 = vmul.f32 %v484, %v504
    %s511 = scalar_lea.vmem %s2, 2
    %512 = vst [vmem:[%s511] sm:$0x1] %v510
    %v513 = vmul.f32 %v487, %v504
    %s514 = scalar_lea.vmem %s2, 3
    %515 = vst [vmem:[%s514] sm:$0x1] %v513
    // Predicated region
    $region14: #{model_1_forward.1} parent=1 // pred_check
      _
    $region15: #{model_1_forward.1} parent=1 // pred_check_branch
      %517 = sbr.rel (0) target = $region17
    $region16: #{model_1_forward.1} parent=1 // pred_region
      _
    $region17: #{model_1_forward.1} parent=1 // pred_fallthru
      _
    // Predicated region
    $region18: #{model_1_forward.1} parent=1 // pred_check
      _
    $region19: #{model_1_forward.1} parent=1 // pred_check_branch
      %519 = sbr.rel (0) target = $region21
    $region20: #{model_1_forward.1} parent=1 // pred_region
      _
    $region21: #{model_1_forward.1} parent=1 // pred_fallthru
      _
    %520 = vsyncpa [#allocation3], 1

</llo_original>
